<compile_context>
chip_gen: v7x
topology: tpu7x:2x2x1
jax: 0.10.0
libtpu: 0.0.40
codegen_flags: <defaults>
</compile_context>

<pallas_src>
import functools

import jax
import jax.numpy as jnp
from jax.experimental import pallas as pl
from jax.experimental.pallas import tpu as pltpu

_INV_SQRT2 = 0.7071067811865476  # 1/sqrt(2), hoisted Python constant


def _round_up(x, m):
    return (x + m - 1) // m * m


def _gelu_exact(h):
    # Exact erf-based GELU in fp32 (matches torch.nn.GELU() default).
    return 0.5 * h * (1.0 + jax.lax.erf(h * _INV_SQRT2))


def _mlp_kernel(x_ref, w1_ref, b1_ref, w2_ref, b2_ref, o_ref, *scratch,
                cache_h, acc_in_out):
    """One (token-tile i, llm-tile j, inter-tile k) grid step.

    x_ref : (tm, vision_dim)     w1_ref: (vision_dim, tk)   b1_ref: (1, tk)
    w2_ref: (tk, tn)             b2_ref: (1, tn)            o_ref : (tm, tn)
    scratch = [acc (tm,tn) f32  if output dtype != f32]
            + [h   (n_k,tm,tk)  if the llm_dim axis is tiled (n_j > 1)]
    """
    k = pl.program_id(2)

    rest = list(scratch)
    acc_ref = o_ref if acc_in_out else rest.pop(0)
    h_ref = rest.pop(0) if cache_h else None

    # Fold the output bias into the accumulator init (k == 0).
    @pl.when(k == 0)
    def _init():
        acc_ref[...] = jnp.broadcast_to(
            b2_ref[...].astype(jnp.float32), acc_ref.shape)

    if cache_h:
        # Hidden activation computed once per token tile (j == 0), cached in
        # VMEM; llm-dim tiles j > 0 only replay the second matmul.
        j = pl.program_id(1)

        @pl.when(j == 0)
        def _fill():
            h = jnp.dot(x_ref[...], w1_ref[...],
                        preferred_element_type=jnp.float32)
            h = _gelu_exact(h + b1_ref[...].astype(jnp.float32))
            h_ref[k] = h.astype(h_ref.dtype)

        h_k = h_ref[k]
    else:
        h = jnp.dot(x_ref[...], w1_ref[...],
                    preferred_element_type=jnp.float32)
        h = _gelu_exact(h + b1_ref[...].astype(jnp.float32))
        # Exact for f32 weights; 2x MXU / half the weight DMA for bf16.
        h_k = h.astype(w2_ref.dtype)

    acc_ref[...] += jnp.dot(h_k, w2_ref[...],
                            preferred_element_type=jnp.float32)

    if not acc_in_out:
        @pl.when(k == pl.num_programs(2) - 1)
        def _finalize():
            o_ref[...] = acc_ref[...].astype(o_ref.dtype)


def make_mlp_projector(w1, b1, w2, b2, *, tm=256, tn=None, tk=None,
                       vmem_limit_bytes=None):
    """Build projector_fn: x[B, N, vision_dim] -> [B, N, llm_dim].

    Weights are stored [in_dim, out_dim] (transpose of torch's [out, in]).
    All one-time work (tile selection, K-padding of the weights) happens
    here, OUTSIDE the per-call hot path.  On v5e, tm=128 matches the 4x128
    MXU if you want to override the default.
    """
    w1 = jnp.asarray(w1)
    b1 = jnp.asarray(b1)
    w2 = jnp.asarray(w2)
    b2 = jnp.asarray(b2)
    vision_dim, inter_dim = w1.shape
    llm_dim = w2.shape[1]
    wb = jnp.dtype(w1.dtype).itemsize

    # ---- per-generation VMEM budget (v5e/v6e: 128 MiB, v7x: 64 MiB/TC) ----
    try:
        vmem_cap = int(getattr(pltpu.get_tpu_info(), "vmem_capacity_bytes",
                               64 * 1024 * 1024))
    except Exception:  # not queryable -> be conservative (v7x figure)
        vmem_cap = 64 * 1024 * 1024
    if vmem_limit_bytes is None:
        vmem_limit_bytes = int(vmem_cap * 0.85)
    budget = int(vmem_limit_bytes * 0.9)  # headroom for compiler scratch

    # ---- reduction (inter_dim) tile: fatter K steps when VMEM is plentiful
    if tk is None:
        tk = 1024 if vmem_cap >= 96 * 1024 * 1024 else 512
    tk_eff = inter_dim if inter_dim <= tk else _round_up(tk, 128)

    def _est(tn_try, tk_try, with_h_cache):
        kp = _round_up(inter_dim, tk_try)
        est = (2 * tm * vision_dim * wb          # x   (double buffered)
               + 2 * vision_dim * tk_try * wb    # w1
               + 2 * tk_try * tn_try * wb        # w2
               + 2 * tm * tn_try * 4             # out (worst case fp32)
               + tm * tn_try * 4                 # acc scratch (worst case)
               + 4 * (tk_try + tn_try) * wb)     # biases
        if with_h_cache:
            est += tm * kp * wb                  # hidden-activation cache
        return est

    # ---- output (llm_dim) tile: prefer collapsing the j axis entirely ----
    if tn is not None:
        tn_eff = llm_dim if tn >= llm_dim else min(_round_up(tn, 128), llm_dim)
    elif _est(llm_dim, tk_eff, False) <= budget:
        tn_eff = llm_dim                         # single j tile, fully fused
    else:
        tn_eff = None
        for cand in (4096, 2048, 1024, 512, 256, 128):
            if cand < llm_dim and _est(cand, tk_eff, True) <= budget:
                tn_eff = cand
                break
        if tn_eff is None:                       # last resort: shrink K too
            tk_eff = min(tk_eff, 256)
            tn_eff = 128

    n_j = pl.cdiv(llm_dim, tn_eff)
    cache_h = n_j > 1

    # ---- one-time K padding of the weights (outside the hot path).
    #      GELU(0) = 0, so padded inter columns/rows contribute nothing. ----
    k_pad = _round_up(inter_dim, tk_eff)
    b1_2d = b1.reshape(1, inter_dim)
    b2_2d = b2.reshape(1, llm_dim)
    if k_pad != inter_dim:
        w1 = jnp.pad(w1, ((0, 0), (0, k_pad - inter_dim)))
        b1_2d = jnp.pad(b1_2d, ((0, 0), (0, k_pad - inter_dim)))
        w2 = jnp.pad(w2, ((0, k_pad - inter_dim), (0, 0)))
    n_k = k_pad // tk_eff

    # w1/b1 are only consumed at j == 0; for j > 0 collapse their block index
    # to a constant so consecutive identical indices skip the DMA re-fetch.
    if cache_h:
        w1_map = lambda i, j, k: (0, jnp.where(j == 0, k, 0))
        # The h cache requires j to be swept sequentially on one core.
        dim_sem = ("parallel", "arbitrary", "arbitrary")
    else:
        w1_map = lambda i, j, k: (0, k)
        dim_sem = ("parallel", "parallel", "arbitrary")

    @jax.jit
    def _apply(x, w1p, b1p, w2p, b2p):
        B, N, _ = x.shape
        T = B * N
        x2 = x.reshape(T, vision_dim)
        out_dtype = x.dtype
        acc_in_out = jnp.dtype(out_dtype) == jnp.float32

        # Sublane granule for the token axis: f32 -> 8, bf16 -> 16, int8 -> 32.
        sub = {4: 8, 2: 16, 1: 32}.get(jnp.dtype(x.dtype).itemsize, 8)
        tm_eff = _round_up(min(tm, _round_up(T, sub)), sub)
        n_i = pl.cdiv(T, tm_eff)
        # Keep both v7x TensorCores busy when tokens are the only parallel
        # axis (free on single-TC v5e/v6e).
        if n_i < 2 and T > sub:
            tm_eff = _round_up(-(-T // 2), sub)
            n_i = pl.cdiv(T, tm_eff)

        grid = (n_i, n_j, n_k)

        scratch = []
        if not acc_in_out:
            scratch.append(pltpu.VMEM((tm_eff, tn_eff), jnp.float32))
        if cache_h:
            scratch.append(pltpu.VMEM((n_k, tm_eff, tk_eff), w2p.dtype))

        kernel = functools.partial(_mlp_kernel, cache_h=cache_h,
                                   acc_in_out=acc_in_out)

        out2d = pl.pallas_call(
            kernel,
            out_shape=jax.ShapeDtypeStruct((T, llm_dim), out_dtype),
            grid_spec=pltpu.PrefetchScalarGridSpec(
                num_scalar_prefetch=0,
                grid=grid,
                in_specs=[
                    # Non-divisible token grid: the partial last block reads
                    # undefined rows which are dropped on writeback (rows are
                    # independent), so x is never padded/copied.
                    pl.BlockSpec((tm_eff, vision_dim), lambda i, j, k: (i, 0)),
                    pl.BlockSpec((vision_dim, tk_eff), w1_map),
                    pl.BlockSpec((1, tk_eff), w1_map),
                    pl.BlockSpec((tk_eff, tn_eff), lambda i, j, k: (k, j)),
                    pl.BlockSpec((1, tn_eff), lambda i, j, k: (0, j)),
                ],
                out_specs=pl.BlockSpec((tm_eff, tn_eff),
                                       lambda i, j, k: (i, j)),
                scratch_shapes=scratch,
            ),
            compiler_params=pltpu.CompilerParams(
                dimension_semantics=dim_sem,
                vmem_limit_bytes=vmem_limit_bytes,
            ),
        )(x2, w1p, b1p, w2p, b2p)

        return out2d.reshape(B, N, llm_dim)

    def projector(x):
        return _apply(x, w1, b1_2d, w2, b2_2d)

    return projector


def _init_params(key, vision_dim, llm_dim, expansion_factor=10):
    """Synthetic init mimicking nn.Linear's uniform(-1/sqrt(in), 1/sqrt(in))."""
    inter_dim = vision_dim * expansion_factor
    k1, k2, k3, k4 = jax.random.split(key, 4)
    lim1 = 1.0 / jnp.sqrt(vision_dim)
    lim2 = 1.0 / jnp.sqrt(inter_dim)
    # Weights stored as [in_dim, out_dim] (transpose of torch's [out, in]).
    w1 = jax.random.uniform(k1, (vision_dim, inter_dim), jnp.float32, -lim1, lim1)
    b1 = jax.random.uniform(k2, (inter_dim,), jnp.float32, -lim1, lim1)
    w2 = jax.random.uniform(k3, (inter_dim, llm_dim), jnp.float32, -lim2, lim2)
    b2 = jax.random.uniform(k4, (llm_dim,), jnp.float32, -lim2, lim2)
    return w1, b1, w2, b2


def _reference(x, w1, b1, w2, b2):
    h = x.reshape(-1, x.shape[-1]) @ w1 + b1
    h = _gelu_exact(h)
    return (h @ w2 + b2).reshape(*x.shape[:-1], w2.shape[1])


if __name__ == "__main__":
    key = jax.random.PRNGKey(0)
    kx, kp, kp2 = jax.random.split(key, 3)

    # Small shapes consistent with the module: [batch, num_patches, vision_dim]
    B, N, vision_dim, llm_dim = 2, 8, 32, 64
    expansion_factor = 10  # intermediate_dim = 320

    x = jax.random.normal(kx, (B, N, vision_dim), jnp.float32)
    w1, b1, w2, b2 = _init_params(kp, vision_dim, llm_dim, expansion_factor)

    # Default path: j axis collapsed, f32 output accumulated in-place.
    projector = make_mlp_projector(w1, b1, w2, b2)
    out = jax.block_until_ready(projector(x))
    ref = _reference(x, w1, b1, w2, b2)
    assert out.shape == (B, N, llm_dim)
    assert jnp.allclose(out, ref, atol=1e-5, rtol=1e-5)

    # Also exercise the llm_dim-tiled path (hidden activation cached in VMEM
    # across j tiles, one-time K padding of the weights).
    llm_dim2 = 256
    w1b, b1b, w2b, b2b = _init_params(kp2, vision_dim, llm_dim2,
                                      expansion_factor)
    projector2 = make_mlp_projector(w1b, b1b, w2b, b2b, tn=128, tk=128)
    out2 = jax.block_until_ready(projector2(x))
    ref2 = _reference(x, w1b, b1b, w2b, b2b)
    assert out2.shape == (B, N, llm_dim2)
    assert jnp.allclose(out2, ref2, atol=1e-4, rtol=1e-4)

    print("KERNEL_OK")
</pallas_src>

<mosaic_0001>
module attributes {stable_mosaic.version = 11 : i64} {
  func.func @_mlp_kernel(%arg0: i32, %arg1: i32, %arg2: i32, %arg3: memref<8x32xf32, #tpu.memory_space<vmem>>, %arg4: memref<32x320xf32, #tpu.memory_space<vmem>>, %arg5: memref<1x320xf32, #tpu.memory_space<vmem>>, %arg6: memref<320x64xf32, #tpu.memory_space<vmem>>, %arg7: memref<1x64xf32, #tpu.memory_space<vmem>>, %arg8: memref<8x64xf32, #tpu.memory_space<vmem>>) attributes {dimension_semantics = [#tpu.dimension_semantics<parallel>, #tpu.dimension_semantics<parallel>, #tpu.dimension_semantics<arbitrary>], iteration_bounds = array<i64: 2, 1, 1>, scalar_prefetch = 0 : i64, scratch_operands = 0 : i64, tpu.core_type = #tpu.core_type<tc>, window_params = [{transform_indices = @transform_0, window_bounds = array<i64: 8, 32>}, {transform_indices = @transform_1, window_bounds = array<i64: 32, 320>}, {transform_indices = @transform_2, window_bounds = array<i64: 1, 320>}, {transform_indices = @transform_3, window_bounds = array<i64: 320, 64>}, {transform_indices = @transform_4, window_bounds = array<i64: 1, 64>}, {transform_indices = @transform_5, window_bounds = array<i64: 8, 64>}]} {
    %c0_i32 = arith.constant 0 : i32
    %0 = arith.cmpi eq, %arg2, %c0_i32 : i32
    %1 = arith.extui %0 : i1 to i32
    %c0_i32_0 = arith.constant 0 : i32
    %2 = arith.cmpi ne, %1, %c0_i32_0 : i32
    scf.if %2 {
      %c0_16 = arith.constant 0 : index
      %c0_17 = arith.constant 0 : index
      %22 = vector.load %arg7[%c0_16, %c0_17] : memref<1x64xf32, #tpu.memory_space<vmem>>, vector<1x64xf32>
      %23 = vector.shape_cast %22 : vector<1x64xf32> to vector<1x64xf32>
      %24 = vector.broadcast %23 : vector<1x64xf32> to vector<8x64xf32>
      %c0_18 = arith.constant 0 : index
      %c0_19 = arith.constant 0 : index
      %25 = vector.load %arg8[%c0_18, %c0_19] : memref<8x64xf32, #tpu.memory_space<vmem>>, vector<8x64xf32>
      tpu.vector_store %arg8[%c0_18, %c0_19], %24 {strides = array<i32>} : memref<8x64xf32, #tpu.memory_space<vmem>>, vector<8x64xf32>,
    } else {
    }
    %c0 = arith.constant 0 : index
    %c0_1 = arith.constant 0 : index
    %3 = vector.load %arg3[%c0, %c0_1] : memref<8x32xf32, #tpu.memory_space<vmem>>, vector<8x32xf32>
    %c0_2 = arith.constant 0 : index
    %c0_3 = arith.constant 0 : index
    %4 = vector.load %arg4[%c0_2, %c0_3] : memref<32x320xf32, #tpu.memory_space<vmem>>, vector<32x320xf32>
    %cst = arith.constant dense<0.000000e+00> : vector<8x320xf32>
    %5 = tpu.matmul %3, %4, %cst {dimension_numbers = #tpu.dot_dimension_numbers<[1], [0], [0], [1], [0, 0, 1, 1], [], []>} : vector<8x32xf32>, vector<32x320xf32>, vector<8x320xf32> -> vector<8x320xf32>
    %c0_4 = arith.constant 0 : index
    %c0_5 = arith.constant 0 : index
    %6 = vector.load %arg5[%c0_4, %c0_5] : memref<1x320xf32, #tpu.memory_space<vmem>>, vector<1x320xf32>
    %7 = vector.broadcast %6 : vector<1x320xf32> to vector<8x320xf32>
    %8 = arith.addf %5, %7 : vector<8x320xf32>
    %cst_6 = arith.constant 5.000000e-01 : f32
    %9 = vector.broadcast %cst_6 : f32 to vector<8x320xf32>
    %10 = arith.mulf %9, %8 : vector<8x320xf32>
    %cst_7 = arith.constant 0.707106769 : f32
    %11 = vector.broadcast %cst_7 : f32 to vector<8x320xf32>
    %12 = arith.mulf %8, %11 : vector<8x320xf32>
    %13 = math.erf %12 : vector<8x320xf32>
    %cst_8 = arith.constant 1.000000e+00 : f32
    %14 = vector.broadcast %cst_8 : f32 to vector<8x320xf32>
    %15 = arith.addf %14, %13 : vector<8x320xf32>
    %16 = arith.mulf %10, %15 : vector<8x320xf32>
    %c0_9 = arith.constant 0 : index
    %c0_10 = arith.constant 0 : index
    %17 = vector.load %arg8[%c0_9, %c0_10] : memref<8x64xf32, #tpu.memory_space<vmem>>, vector<8x64xf32>
    %c0_11 = arith.constant 0 : index
    %c0_12 = arith.constant 0 : index
    %18 = vector.load %arg6[%c0_11, %c0_12] : memref<320x64xf32, #tpu.memory_space<vmem>>, vector<320x64xf32>
    %cst_13 = arith.constant dense<0.000000e+00> : vector<8x64xf32>
    %19 = tpu.matmul %16, %18, %cst_13 {dimension_numbers = #tpu.dot_dimension_numbers<[1], [0], [0], [1], [0, 0, 1, 1], [], []>} : vector<8x320xf32>, vector<320x64xf32>, vector<8x64xf32> -> vector<8x64xf32>
    %20 = arith.addf %17, %19 : vector<8x64xf32>
    %c0_14 = arith.constant 0 : index
    %c0_15 = arith.constant 0 : index
    %21 = vector.load %arg8[%c0_14, %c0_15] : memref<8x64xf32, #tpu.memory_space<vmem>>, vector<8x64xf32>
    tpu.vector_store %arg8[%c0_14, %c0_15], %20 {strides = array<i32>} : memref<8x64xf32, #tpu.memory_space<vmem>>, vector<8x64xf32>,
    return
  }
  func.func @transform_0(%arg0: i32, %arg1: i32, %arg2: i32) -> (i32, i32) {
    %c0_i32 = arith.constant 0 : i32
    %c0_i32_0 = arith.constant 0 : i32
    return %arg0, %c0_i32 : i32, i32
  }
  func.func @transform_1(%arg0: i32, %arg1: i32, %arg2: i32) -> (i32, i32) {
    %c0_i32 = arith.constant 0 : i32
    %c0_i32_0 = arith.constant 0 : i32
    return %c0_i32, %arg2 : i32, i32
  }
  func.func @transform_2(%arg0: i32, %arg1: i32, %arg2: i32) -> (i32, i32) {
    %c0_i32 = arith.constant 0 : i32
    %c0_i32_0 = arith.constant 0 : i32
    return %c0_i32, %arg2 : i32, i32
  }
  func.func @transform_3(%arg0: i32, %arg1: i32, %arg2: i32) -> (i32, i32) {
    %c0_i32 = arith.constant 0 : i32
    return %arg2, %arg1 : i32, i32
  }
  func.func @transform_4(%arg0: i32, %arg1: i32, %arg2: i32) -> (i32, i32) {
    %c0_i32 = arith.constant 0 : i32
    %c0_i32_0 = arith.constant 0 : i32
    return %c0_i32, %arg1 : i32, i32
  }
  func.func @transform_5(%arg0: i32, %arg1: i32, %arg2: i32) -> (i32, i32) {
    %c0_i32 = arith.constant 0 : i32
    return %arg0, %arg1 : i32, i32
  }
}

</mosaic_0001>

<llo_original>
// kernel: _apply.1
$region0: #{_apply.1}
  #allocation0 [shape = 'u32[]', space=smem, size = 0x4, offset = 0x4, fixed_abs, tag = 'smem constant byte address 0x4 - core index']
  #allocation1 [shape = 'u32[144,128]{1,0:T(1,128)}', space=vmem, size = 0x12000, scoped, tag = 'internal scratch']
  %s0 = inlined_call_operand.vmem [shape: f32[16,32], index: 0, kind: input, shape index: {}]
  %s1 = inlined_call_operand.vmem [shape: f32[32,320], index: 1, kind: input, shape index: {}]
  %s2 = inlined_call_operand.vmem [shape: f32[1,320], index: 2, kind: input, shape index: {}]
  %s3 = inlined_call_operand.vmem [shape: f32[320,64], index: 3, kind: input, shape index: {}]
  %s4 = inlined_call_operand.vmem [shape: f32[1,64], index: 4, kind: input, shape index: {}]
  %s5 = inlined_call_operand.hbm [shape: f32[16,64], index: 5, kind: output, shape index: {}]
  %s6 = sld [smem:[#allocation0]]
  $region57: #{_apply.1} parent=0
    _
  %s8 = ssub.s32 1, %s6
  %s9 = scalar_select 0, %s8, %s6
  $region1: #{_apply.1} parent=0
    #allocation2 [shape = 'u8[8192]{0}', space=vmem, size = 0x2000, scoped, tag = 'output window, operand 0']
    #allocation3 [shape = 's32[2]{0}', space=sflag, size = 0x8, scoped, tag = 'scoped memory for _apply.1']
    %10 = vsyncpa [#allocation3], 0
    %s11 = scalar_lea.sflag [#allocation3], 1
    %12 = vsyncpa %s11, 0
    loop: start=0, step=1, limit=4
    $region2: #{_apply.1} parent=1 // loop_pre_header
      _
    $region3: #{_apply.1} parent=1 // loop_header
      %s14 = sphi 0, %s18
      %p15 = scmp.ge.s32.totalorder %s14, 4
      %s21 = sphi 0, %s40
      %s22 = sphi 0, %s36
      %s23 = sphi 0, %s32
      %s24 = sphi 0, %s21
      %s25 = sphi 0, %s22
      %s26 = sphi 0, %s23
      %s27 = sphi 0, %s24
      %s28 = sphi 0, %s25
      %s29 = sphi 0, %s26
      %s43 = sphi 0, %s45
      %s46 = sphi 0, %s43
      %s47 = sphi 0, %s46
      %s63 = sphi 0, %s47
      %s69 = sphi 0, %s71
      %s72 = sphi 0, %s69
      %s73 = sphi 0, %s72
      %s89 = sphi 0, %s73
      %s95 = sphi 0, %s97
      %s98 = sphi 0, %s95
      %s99 = sphi 0, %s98
      %s115 = sphi 0, %s99
      %s123 = sphi 0, %s125
      %s126 = sphi 0, %s123
      %s127 = sphi 0, %s126
      %s143 = sphi 0, %s127
      %s149 = sphi 0, %s151
      %s152 = sphi 0, %s149
      %s153 = sphi 0, %s152
      %s169 = sphi 0, %s153
      %s177 = sphi 0, %s179
      %s180 = sphi 0, %s177
      %s181 = sphi 0, %s180
      %s197 = sphi 0, %s181
    $region4: #{_apply.1} parent=1 // loop_header_branch
      %17 = sbr.rel (%p15) target = $region8
    $region5: #{_apply.1} parent=1 // loop_body
      %s19 = ssub.s32 %s14, 1
      %s20 = ssub.s32 %s14, 2
      %s30 = sadd.s32 1, %s23
      %p31 = scmp.ge.s32.totalorder %s30, 1
      %s32 = scalar_select %p31, 0, %s30
      %s33 = sadd.s32 1, %s22
      %s34 = scalar_select %p31, %s33, %s22
      %p35 = scmp.ge.s32.totalorder %s34, 1
      %s36 = scalar_select %p35, 0, %s34
      %s37 = sadd.s32 1, %s21
      %s38 = scalar_select %p35, %s37, %s21
      %p39 = scmp.ge.s32.totalorder %s38, 2
      %s40 = scalar_select %p39, 0, %s38
      %s41 = ssub.s32 %s21, %s40
      %p42 = scmp.eq.s32.totalorder %s41, 0
      %s44 = sadd.s32 %s43, 1
      %s45 = scalar_select %p42, %s43, %s44
      %p48 = pneg %p42
      %p49 = scmp.eq.s32.totalorder %s14, 1
      %p50 = por %p48, %p49
      %p51 = scmp.ne.s32.totalorder %s43, %s46
      %p52 = scmp.eq.s32.totalorder %s14, 0
      %p53 = por %p51, %p52
      %p54 = scmp.ne.s32.totalorder %s43, %s46
      %p55 = scmp.eq.s32.totalorder %s19, 1
      %p56 = por %p54, %p55
      %p57 = scmp.ne.s32.totalorder %s46, %s47
      %p58 = scmp.eq.s32.totalorder %s19, 0
      %p59 = por %p57, %p58
      %p60 = scmp.ne.s32.totalorder %s46, %s47
      %p61 = scmp.eq.s32.totalorder %s20, 1
      %p62 = por %p60, %p61
      %p64 = scmp.ne.s32.totalorder %s47, %s63
      %p65 = scmp.eq.s32.totalorder %s20, 0
      %p66 = por %p64, %p65
      %s67 = ssub.s32 %s23, %s32
      %p68 = scmp.eq.s32.totalorder %s67, 0
      %s70 = sadd.s32 %s69, 1
      %s71 = scalar_select %p68, %s69, %s70
      %p74 = pneg %p68
      %p75 = scmp.eq.s32.totalorder %s14, 1
      %p76 = por %p74, %p75
      %p77 = scmp.ne.s32.totalorder %s69, %s72
      %p78 = scmp.eq.s32.totalorder %s14, 0
      %p79 = por %p77, %p78
      %p80 = scmp.ne.s32.totalorder %s69, %s72
      %p81 = scmp.eq.s32.totalorder %s19, 1
      %p82 = por %p80, %p81
      %p83 = scmp.ne.s32.totalorder %s72, %s73
      %p84 = scmp.eq.s32.totalorder %s19, 0
      %p85 = por %p83, %p84
      %p86 = scmp.ne.s32.totalorder %s72, %s73
      %p87 = scmp.eq.s32.totalorder %s20, 1
      %p88 = por %p86, %p87
      %p90 = scmp.ne.s32.totalorder %s73, %s89
      %p91 = scmp.eq.s32.totalorder %s20, 0
      %p92 = por %p90, %p91
      %s93 = ssub.s32 %s23, %s32
      %p94 = scmp.eq.s32.totalorder %s93, 0
      %s96 = sadd.s32 %s95, 1
      %s97 = scalar_select %p94, %s95, %s96
      %p100 = pneg %p94
      %p101 = scmp.eq.s32.totalorder %s14, 1
      %p102 = por %p100, %p101
      %p103 = scmp.ne.s32.totalorder %s95, %s98
      %p104 = scmp.eq.s32.totalorder %s14, 0
      %p105 = por %p103, %p104
      %p106 = scmp.ne.s32.totalorder %s95, %s98
      %p107 = scmp.eq.s32.totalorder %s19, 1
      %p108 = por %p106, %p107
      %p109 = scmp.ne.s32.totalorder %s98, %s99
      %p110 = scmp.eq.s32.totalorder %s19, 0
      %p111 = por %p109, %p110
      %p112 = scmp.ne.s32.totalorder %s98, %s99
      %p113 = scmp.eq.s32.totalorder %s20, 1
      %p114 = por %p112, %p113
      %p116 = scmp.ne.s32.totalorder %s99, %s115
      %p117 = scmp.eq.s32.totalorder %s20, 0
      %p118 = por %p116, %p117
      %s119 = ssub.s32 %s23, %s32
      %s120 = ssub.s32 %s22, %s36
      %s121 = sor.u32 %s119, %s120
      %p122 = scmp.eq.s32.totalorder %s121, 0
      %s124 = sadd.s32 %s123, 1
      %s125 = scalar_select %p122, %s123, %s124
      %p128 = pneg %p122
      %p129 = scmp.eq.s32.totalorder %s14, 1
      %p130 = por %p128, %p129
      %p131 = scmp.ne.s32.totalorder %s123, %s126
      %p132 = scmp.eq.s32.totalorder %s14, 0
      %p133 = por %p131, %p132
      %p134 = scmp.ne.s32.totalorder %s123, %s126
      %p135 = scmp.eq.s32.totalorder %s19, 1
      %p136 = por %p134, %p135
      %p137 = scmp.ne.s32.totalorder %s126, %s127
      %p138 = scmp.eq.s32.totalorder %s19, 0
      %p139 = por %p137, %p138
      %p140 = scmp.ne.s32.totalorder %s126, %s127
      %p141 = scmp.eq.s32.totalorder %s20, 1
      %p142 = por %p140, %p141
      %p144 = scmp.ne.s32.totalorder %s127, %s143
      %p145 = scmp.eq.s32.totalorder %s20, 0
      %p146 = por %p144, %p145
      %s147 = ssub.s32 %s22, %s36
      %p148 = scmp.eq.s32.totalorder %s147, 0
      %s150 = sadd.s32 %s149, 1
      %s151 = scalar_select %p148, %s149, %s150
      %p154 = pneg %p148
      %p155 = scmp.eq.s32.totalorder %s14, 1
      %p156 = por %p154, %p155
      %p157 = scmp.ne.s32.totalorder %s149, %s152
      %p158 = scmp.eq.s32.totalorder %s14, 0
      %p159 = por %p157, %p158
      %p160 = scmp.ne.s32.totalorder %s149, %s152
      %p161 = scmp.eq.s32.totalorder %s19, 1
      %p162 = por %p160, %p161
      %p163 = scmp.ne.s32.totalorder %s152, %s153
      %p164 = scmp.eq.s32.totalorder %s19, 0
      %p165 = por %p163, %p164
      %p166 = scmp.ne.s32.totalorder %s152, %s153
      %p167 = scmp.eq.s32.totalorder %s20, 1
      %p168 = por %p166, %p167
      %p170 = scmp.ne.s32.totalorder %s153, %s169
      %p171 = scmp.eq.s32.totalorder %s20, 0
      %p172 = por %p170, %p171
      %s173 = ssub.s32 %s21, %s40
      %s174 = ssub.s32 %s22, %s36
      %s175 = sor.u32 %s173, %s174
      %p176 = scmp.eq.s32.totalorder %s175, 0
      %s178 = sadd.s32 %s177, 1
      %s179 = scalar_select %p176, %s177, %s178
      %p182 = pneg %p176
      %p183 = scmp.eq.s32.totalorder %s14, 1
      %p184 = por %p182, %p183
      %p185 = scmp.ne.s32.totalorder %s177, %s180
      %p186 = scmp.eq.s32.totalorder %s14, 0
      %p187 = por %p185, %p186
      %p188 = scmp.ne.s32.totalorder %s177, %s180
      %p189 = scmp.eq.s32.totalorder %s19, 1
      %p190 = por %p188, %p189
      %p191 = scmp.ne.s32.totalorder %s180, %s181
      %p192 = scmp.eq.s32.totalorder %s19, 0
      %p193 = por %p191, %p192
      %p194 = scmp.ne.s32.totalorder %s180, %s181
      %p195 = scmp.eq.s32.totalorder %s20, 1
      %p196 = por %p194, %p195
      %p198 = scmp.ne.s32.totalorder %s181, %s197
      %p199 = scmp.eq.s32.totalorder %s20, 0
      %p200 = por %p198, %p199
      %p201 = scmp.le.s32.totalorder 1, %s14
      %p202 = scmp.lt.s32.totalorder %s14, 3
      %p203 = pnand %p201, %p202
      %p204 = pneg %p203
      // Predicated region
      $region9: #{_apply.1} parent=5 // pred_check
        _
      $region10: #{_apply.1} parent=5 // pred_check_branch
        %206 = sbr.rel (%p203) target = $region12
      $region11: #{_apply.1} parent=5 // pred_region
        %s207 = ssub.s32 %s14, 1
        // Predicated region
        $region13: #{_apply.1} parent=11 // pred_check
          %p208 = pneg %p85
        $region14: #{_apply.1} parent=11 // pred_check_branch
          %210 = sbr.rel (%p208) target = $region16
        $region15: #{_apply.1} parent=11 // pred_region
          %s211 = smul.u32 3, %s26
          %p212 = scmp.lt.s32.totalorder %s211, 2
          %s213 = scalar_select %p212, %s211, 2
          %s214 = smul.addr %s213, 8
          %s215 = scalar_lea.vmem %s1, %s214
          %s216 = smul.u32 3, %s26
        $region16: #{_apply.1} parent=11 // pred_fallthru
          _
        // Predicated region
        $region17: #{_apply.1} parent=11 // pred_check
          %p217 = pneg %p111
        $region18: #{_apply.1} parent=11 // pred_check_branch
          %219 = sbr.rel (%p217) target = $region20
        $region19: #{_apply.1} parent=11 // pred_region
          %s220 = smul.u32 3, %s26
          %p221 = scmp.lt.s32.totalorder %s220, 2
          %s222 = scalar_select %p221, %s220, 2
          %s223 = scalar_lea.vmem %s2, %s222
          %s224 = smul.u32 3, %s26
        $region20: #{_apply.1} parent=11 // pred_fallthru
          _
        // Predicated region
        $region21: #{_apply.1} parent=11 // pred_check
          %p225 = pneg %p139
        $region22: #{_apply.1} parent=11 // pred_check_branch
          %227 = sbr.rel (%p225) target = $region24
        $region23: #{_apply.1} parent=11 // pred_region
          %s228 = smul.u32 40, %s26
          %p229 = scmp.lt.s32.totalorder %s228, 39
          %s230 = scalar_select %p229, %s228, 39
          %p231 = scmp.lt.s32.totalorder %s25, 0
          %s232 = scalar_select %p231, %s25, 0
          %s233 = sadd.s32 %s232, %s230
          %s234 = smul.addr %s233, 8
          %s235 = scalar_lea.vmem %s3, %s234
          %s236 = smul.u32 40, %s26
        $region24: #{_apply.1} parent=11 // pred_fallthru
          _
        // Predicated region
        $region25: #{_apply.1} parent=11 // pred_check
          %p237 = pneg %p165
        $region26: #{_apply.1} parent=11 // pred_check_branch
          %239 = sbr.rel (%p237) target = $region28
        $region27: #{_apply.1} parent=11 // pred_region
          %p240 = scmp.lt.s32.totalorder %s25, 0
          %s241 = scalar_select %p240, %s25, 0
          %s242 = scalar_lea.vmem %s4, %s241
        $region28: #{_apply.1} parent=11 // pred_fallthru
          _
      $region12: #{_apply.1} parent=5 // pred_fallthru
        _
      %p243 = scmp.lt.s32.totalorder %s14, 2
      // Predicated region
      $region29: #{_apply.1} parent=5 // pred_check
        %p244 = pneg %p243
      $region30: #{_apply.1} parent=5 // pred_check_branch
        %246 = sbr.rel (%p244) target = $region32
      $region31: #{_apply.1} parent=5 // pred_region
        // Predicated region
        $region33: #{_apply.1} parent=31 // pred_check
          %p247 = pneg %p53
        $region34: #{_apply.1} parent=31 // pred_check_branch
          %249 = sbr.rel (%p247) target = $region36
        $region35: #{_apply.1} parent=31 // pred_region
          %p250 = scmp.lt.s32.totalorder %s21, 1
          %s251 = scalar_select %p250, %s21, 1
          %s252 = smul.addr %s251, 8
          %s253 = scalar_lea.vmem %s0, %s252
        $region36: #{_apply.1} parent=31 // pred_fallthru
          _
      $region32: #{_apply.1} parent=5 // pred_fallthru
        _
      %p254 = scmp.le.s32.totalorder 1, %s14
      %p255 = scmp.lt.s32.totalorder %s14, 3
      %p256 = pnand %p254, %p255
      %p257 = pneg %p256
      // Predicated region
      $region37: #{_apply.1} parent=5 // pred_check
        _
      $region38: #{_apply.1} parent=5 // pred_check_branch
        %259 = sbr.rel (%p256) target = $region40
      $region39: #{_apply.1} parent=5 // pred_region
        %s260 = ssub.s32 %s14, 1
        %p261 = scmp.lt.s32.totalorder %s24, 1
        %s262 = scalar_select %p261, %s24, 1
        %s263 = smul.addr %s262, 8
        %s264 = scalar_lea.vmem %s0, %s263
        %p265 = pneg %p59
        %p266 = pneg %p56
        %s267 = smul.u32 3, %s26
        %p268 = scmp.lt.s32.totalorder %s267, 2
        %s269 = scalar_select %p268, %s267, 2
        %s270 = smul.addr %s269, 8
        %s271 = scalar_lea.vmem %s1, %s270
        %p272 = pneg %p85
        %p273 = pneg %p82
        %s274 = smul.u32 3, %s26
        %p275 = scmp.lt.s32.totalorder %s274, 2
        %s276 = scalar_select %p275, %s274, 2
        %s277 = scalar_lea.vmem %s2, %s276
        %p278 = pneg %p111
        %p279 = pneg %p108
        %s280 = smul.u32 40, %s26
        %p281 = scmp.lt.s32.totalorder %s280, 39
        %s282 = scalar_select %p281, %s280, 39
        %p283 = scmp.lt.s32.totalorder %s25, 0
        %s284 = scalar_select %p283, %s25, 0
        %s285 = sadd.s32 %s284, %s282
        %s286 = smul.addr %s285, 8
        %s287 = scalar_lea.vmem %s3, %s286
        %p288 = pneg %p139
        %p289 = pneg %p136
        %p290 = scmp.lt.s32.totalorder %s25, 0
        %s291 = scalar_select %p290, %s25, 0
        %s292 = scalar_lea.vmem %s4, %s291
        %p293 = pneg %p165
        %p294 = pneg %p162
        %p295 = pneg %p193
        %p296 = pneg %p190
        %s297 = sand.u32 %s180, 1
        %s298 = scalar_lea.sflag [#allocation3], %s297
        %s299 = sand.u32 %s180, 1
        %s300 = smul.addr %s299, 8
        %s301 = scalar_lea.vmem [#allocation2], %s300
        %p302 = scmp.lt.s32.totalorder %s24, 1
        %s303 = scalar_select %p302, %s24, 1
        %s304 = smul.addr %s303, 8
        %s305 = scalar_lea.vmem %s0, %s304
        %s306 = smul.u32 3, %s26
        %p307 = scmp.lt.s32.totalorder %s306, 2
        %s308 = scalar_select %p307, %s306, 2
        %s309 = smul.addr %s308, 8
        %s310 = scalar_lea.vmem %s1, %s309
        %s311 = smul.u32 3, %s26
        %s312 = smul.u32 3, %s26
        %p313 = scmp.lt.s32.totalorder %s312, 2
        %s314 = scalar_select %p313, %s312, 2
        %s315 = scalar_lea.vmem %s2, %s314
        %s316 = smul.u32 3, %s26
        %s317 = smul.u32 40, %s26
        %p318 = scmp.lt.s32.totalorder %s317, 39
        %s319 = scalar_select %p318, %s317, 39
        %p320 = scmp.lt.s32.totalorder %s25, 0
        %s321 = scalar_select %p320, %s25, 0
        %s322 = sadd.s32 %s321, %s319
        %s323 = smul.addr %s322, 8
        %s324 = scalar_lea.vmem %s3, %s323
        %s325 = smul.u32 40, %s26
        %p326 = scmp.lt.s32.totalorder %s25, 0
        %s327 = scalar_select %p326, %s25, 0
        %s328 = scalar_lea.vmem %s4, %s327
        %p329 = scmp.eq.s32.totalorder %s26, 0
        // Predicated region
        $region41: #{_apply.1} parent=39 // pred_check
          %p330 = pneg %p329
        $region42: #{_apply.1} parent=39 // pred_check_branch
          %332 = sbr.rel (%p330) target = $region44
        $region43: #{_apply.1} parent=39 // pred_region
          %v333 = vld [vmem:[%s328] sm:$0x1]
          %v335 = vlaneseq
          %v336 = vshrl.u32 %v335, 7
          %v337 = vsub.s32 0, %v336
          %v338 = vrot.slane %v333, %v337
          %vm340 = vcmask 523264
          %341 = vst.msk [vmem:[%s301] sm:$0xff] %vm340, %v338
        $region44: #{_apply.1} parent=39 // pred_fallthru
          _
        %v342 = vld [vmem:[%s305] sm:$0xff]
        %v343 = vld [vmem:[%s310] sm:$0xff]
        %v344 = vld [vmem:[%s310 + $0x8] sm:$0xff]
        %v345 = vld [vmem:[%s310 + $0x10] sm:$0xff]
        %v346 = vld [vmem:[%s310 + $0x18] sm:$0xff]
        %v347 = vld [vmem:[%s310 + $0x20] sm:$0xff]
        %v348 = vld [vmem:[%s310 + $0x28] sm:$0xff]
        %v349 = vld [vmem:[%s310 + $0x30] sm:$0xff]
        %v350 = vld [vmem:[%s310 + $0x38] sm:$0xff]
        %v351 = vld [vmem:[%s310 + $0x40] sm:$0xff]
        %v352 = vld [vmem:[%s310 + $0x48] sm:$0xff]
        %v353 = vld [vmem:[%s310 + $0x50] sm:$0xff]
        %v354 = vld [vmem:[%s310 + $0x58] sm:$0xff]
        %v355 = vld [vmem:[%s315] sm:$0x7]
        %v357 = vlaneseq
        %v358 = vshrl.u32 %v357, 7
        %v359 = vsub.s32 0, %v358
        %v360 = vrot.slane %v355, %v359
        %v361 = vlaneseq
        %v362 = vshrl.u32 %v361, 7
        %v363 = vsub.s32 1, %v362
        %v364 = vrot.slane %v355, %v363
        %v365 = vlaneseq
        %v366 = vshrl.u32 %v365, 7
        %v367 = vsub.s32 2, %v366
        %v368 = vrot.slane %v355, %v367
        %vm372 = vcmask 261120
        %v374 = vsel %vm372, %v342, 0
        %376 = vmatprep.subr.mxu0 %v344
        %377 = vmatpush1.msra.mxu0 %v343
        %378 = vmatprep.subr.mxu0 %v347
        %379 = vmatpush1.msra.mxu0 %v346
        %380 = vmatprep.subr.mxu0 %v350
        %381 = vmatpush1.msra.mxu0 %v349
        %382 = vmatprep.subr.mxu0 %v353
        %383 = vmatpush1.msra.mxu0 %v352
        %384 = vmatprep.subr.mxu0 0.0
        %385 = vmatpush1.msra.mxu0 0.0
        %386 = vmatprep.subr.mxu0 0.0
        %387 = vmatpush1.msra.mxu0 0.0
        %388 = vmatprep.subr.mxu0 0.0
        %389 = vmatpush1.msra.mxu0 0.0
        %390 = vmatprep.subr.mxu0 0.0
        %391 = vmatpush1.msra.mxu0 0.0
        %392 = vmatprep.subr.mxu0 0.0
        %393 = vmatpush1.msra.mxu0 0.0
        %394 = vmatprep.subr.mxu0 0.0
        %395 = vmatpush1.msra.mxu0 0.0
        %396 = vmatprep.subr.mxu0 0.0
        %397 = vmatpush1.msra.mxu0 0.0
        %398 = vmatprep.subr.mxu0 0.0
        %399 = vmatpush1.msra.mxu0 0.0
        %400 = vmatprep.subr.mxu0 0.0
        %401 = vmatpush1.msra.mxu0 0.0
        %402 = vmatprep.subr.mxu0 0.0
        %403 = vmatpush1.msra.mxu0 0.0
        %404 = vmatprep.subr.mxu0 0.0
        %405 = vmatpush1.msra.mxu0 0.0
        %406 = vmatprep.subr.mxu0 0.0
        %407 = vmatpush1.msra.mxu0 0.0
        %408 = vmatprep.subr.mxu0 0.0
        %409 = vmatpush1.msra.mxu0 0.0
        %410 = vmatprep.subr.mxu0 0.0
        %411 = vmatpush1.msra.mxu0 0.0
        %412 = vmatprep.subr.mxu0 0.0
        %413 = vmatpush1.msra.mxu0 0.0
        %414 = vmatprep.subr.mxu0 0.0
        %415 = vmatpush1.msra.mxu0 0.0
        %416 = vmatprep.subr.mxu0 0.0
        %417 = vmatpush1.msra.mxu0 0.0
        %418 = vmatprep.subr.mxu0 0.0
        %419 = vmatpush1.msra.mxu0 0.0
        %420 = vmatprep.subr.mxu0 0.0
        %421 = vmatpush1.msra.mxu0 0.0
        %422 = vmatprep.subr.mxu0 0.0
        %423 = vmatpush1.msra.mxu0 0.0
        %424 = vmatprep.subr.mxu0 0.0
        %425 = vmatpush1.msra.mxu0 0.0
        %426 = vmatprep.subr.mxu0 0.0
        %427 = vmatpush1.msra.mxu0 0.0
        %428 = vmatprep.subr.mxu0 0.0
        %429 = vmatpush1.msra.mxu0 0.0
        %430 = vmatprep.subr.mxu0 0.0
        %431 = vmatpush1.msra.mxu0 0.0
        %432 = vmatprep.subr.mxu0 0.0
        %433 = vmatpush1.msra.mxu0 0.0
        %434 = vmatprep.subr.mxu0 0.0
        %435 = vmatpush1.msra.mxu0 0.0
        %436 = vmatprep.subr.mxu0 0.0
        %437 = vmatpush1.msra.mxu0 0.0
        %438 = vmatprep.subr.mxu0 0.0
        %439 = vmatpush1.msra.mxu0 0.0
        %440 = vmatprep.mubr.f32.mxu0 0.0
        %441 = vmatmul.mubr.f32.gmra.mrb[0].mxu0 %v374
        %v442 = vpop.f32.mrb[0].mxu0
        %v443 = vadd.f32 %v360, %v442
        %v444 = vpop.f32.mrb[0].mxu0
        %v445 = vadd.f32 %v364, %v444
        %446 = vdwg.mxu0
        %447 = vmatprep.subr.mxu0 0.0
        %448 = vmatpush1.msra.mxu0 %v345
        %449 = vmatprep.subr.mxu0 0.0
        %450 = vmatpush1.msra.mxu0 %v348
        %451 = vmatprep.subr.mxu0 0.0
        %452 = vmatpush1.msra.mxu0 %v351
        %453 = vmatprep.subr.mxu0 0.0
        %454 = vmatpush1.msra.mxu0 %v354
        %455 = vmatprep.subr.mxu0 0.0
        %456 = vmatpush1.msra.mxu0 0.0
        %457 = vmatprep.subr.mxu0 0.0
        %458 = vmatpush1.msra.mxu0 0.0
        %459 = vmatprep.subr.mxu0 0.0
        %460 = vmatpush1.msra.mxu0 0.0
        %461 = vmatprep.subr.mxu0 0.0
        %462 = vmatpush1.msra.mxu0 0.0
        %463 = vmatprep.subr.mxu0 0.0
        %464 = vmatpush1.msra.mxu0 0.0
        %465 = vmatprep.subr.mxu0 0.0
        %466 = vmatpush1.msra.mxu0 0.0
        %467 = vmatprep.subr.mxu0 0.0
        %468 = vmatpush1.msra.mxu0 0.0
        %469 = vmatprep.subr.mxu0 0.0
        %470 = vmatpush1.msra.mxu0 0.0
        %471 = vmatprep.subr.mxu0 0.0
        %472 = vmatpush1.msra.mxu0 0.0
        %473 = vmatprep.subr.mxu0 0.0
        %474 = vmatpush1.msra.mxu0 0.0
        %475 = vmatprep.subr.mxu0 0.0
        %476 = vmatpush1.msra.mxu0 0.0
        %477 = vmatprep.subr.mxu0 0.0
        %478 = vmatpush1.msra.mxu0 0.0
        %479 = vmatprep.subr.mxu0 0.0
        %480 = vmatpush1.msra.mxu0 0.0
        %481 = vmatprep.subr.mxu0 0.0
        %482 = vmatpush1.msra.mxu0 0.0
        %483 = vmatprep.subr.mxu0 0.0
        %484 = vmatpush1.msra.mxu0 0.0
        %485 = vmatprep.subr.mxu0 0.0
        %486 = vmatpush1.msra.mxu0 0.0
        %487 = vmatprep.subr.mxu0 0.0
        %488 = vmatpush1.msra.mxu0 0.0
        %489 = vmatprep.subr.mxu0 0.0
        %490 = vmatpush1.msra.mxu0 0.0
        %491 = vmatprep.subr.mxu0 0.0
        %492 = vmatpush1.msra.mxu0 0.0
        %493 = vmatprep.subr.mxu0 0.0
        %494 = vmatpush1.msra.mxu0 0.0
        %495 = vmatprep.subr.mxu0 0.0
        %496 = vmatpush1.msra.mxu0 0.0
        %497 = vmatprep.subr.mxu0 0.0
        %498 = vmatpush1.msra.mxu0 0.0
        %499 = vmatprep.subr.mxu0 0.0
        %500 = vmatpush1.msra.mxu0 0.0
        %501 = vmatprep.subr.mxu0 0.0
        %502 = vmatpush1.msra.mxu0 0.0
        %503 = vmatprep.subr.mxu0 0.0
        %504 = vmatpush1.msra.mxu0 0.0
        %505 = vmatprep.subr.mxu0 0.0
        %506 = vmatpush1.msra.mxu0 0.0
        %507 = vmatprep.subr.mxu0 0.0
        %508 = vmatpush1.msra.mxu0 0.0
        %509 = vmatprep.subr.mxu0 0.0
        %510 = vmatpush1.msra.mxu0 0.0
        %511 = vmatprep.mubr.f32.mxu0 0.0
        %512 = vmatmul.mubr.f32.gmra.mrb[0].mxu0 %v374
        %v513 = vpop.f32.mrb[0].mxu0
        %v514 = vadd.f32 %v368, %v513
        %v515 = vpop.f32.mrb[0].mxu0
        %516 = vdwg.mxu0
        %v517 = vmul.f32 %v443, 0.5
        %v518 = vmul.f32 %v445, 0.5
        %v519 = vmul.f32 %v514, 0.5
        %v520 = vmul.f32 %v443, 0.70710677
        %v521 = vmul.f32 %v445, 0.70710677
        %v522 = vmul.f32 %v514, 0.70710677
        %v523 = verf.f32.pop %v520
        %v524 = verf.f32.pop %v521
        %v525 = verf.f32.pop %v522
        %v526 = vadd.f32 %v523, 1.0
        %v527 = vadd.f32 %v524, 1.0
        %v528 = vadd.f32 %v525, 1.0
        %v529 = vmul.f32 %v517, %v526
        %v530 = vmul.f32 %v518, %v527
        %v531 = vmul.f32 %v519, %v528
        %v532 = vld [vmem:[%s301] sm:$0xff]
        %v533 = vld [vmem:[%s324] sm:$0xff]
        %v534 = vld [vmem:[%s324 + $0x8] sm:$0xff]
        %v535 = vld [vmem:[%s324 + $0x10] sm:$0xff]
        %v536 = vld [vmem:[%s324 + $0x18] sm:$0xff]
        %v537 = vld [vmem:[%s324 + $0x20] sm:$0xff]
        %v538 = vld [vmem:[%s324 + $0x28] sm:$0xff]
        %v539 = vld [vmem:[%s324 + $0x30] sm:$0xff]
        %v540 = vld [vmem:[%s324 + $0x38] sm:$0xff]
        %v541 = vld [vmem:[%s324 + $0x40] sm:$0xff]
        %v542 = vld [vmem:[%s324 + $0x48] sm:$0xff]
        %v543 = vld [vmem:[%s324 + $0x50] sm:$0xff]
        %v544 = vld [vmem:[%s324 + $0x58] sm:$0xff]
        %v545 = vld [vmem:[%s324 + $0x60] sm:$0xff]
        %v546 = vld [vmem:[%s324 + $0x68] sm:$0xff]
        %v547 = vld [vmem:[%s324 + $0x70] sm:$0xff]
        %v548 = vld [vmem:[%s324 + $0x78] sm:$0xff]
        %v549 = vld [vmem:[%s324 + $0x80] sm:$0xff]
        %v550 = vld [vmem:[%s324 + $0x88] sm:$0xff]
        %v551 = vld [vmem:[%s324 + $0x90] sm:$0xff]
        %v552 = vld [vmem:[%s324 + $0x98] sm:$0xff]
        %v553 = vld [vmem:[%s324 + $0xa0] sm:$0xff]
        %v554 = vld [vmem:[%s324 + $0xa8] sm:$0xff]
        %v555 = vld [vmem:[%s324 + $0xb0] sm:$0xff]
        %v556 = vld [vmem:[%s324 + $0xb8] sm:$0xff]
        %v557 = vld [vmem:[%s324 + $0xc0] sm:$0xff]
        %v558 = vld [vmem:[%s324 + $0xc8] sm:$0xff]
        %v559 = vld [vmem:[%s324 + $0xd0] sm:$0xff]
        %v560 = vld [vmem:[%s324 + $0xd8] sm:$0xff]
        %v561 = vld [vmem:[%s324 + $0xe0] sm:$0xff]
        %v562 = vld [vmem:[%s324 + $0xe8] sm:$0xff]
        %v563 = vld [vmem:[%s324 + $0xf0] sm:$0xff]
        %v564 = vld [vmem:[%s324 + $0xf8] sm:$0xff]
        %v565 = vld [vmem:[%s324 + $0x100] sm:$0xff]
        %v566 = vld [vmem:[%s324 + $0x108] sm:$0xff]
        %v567 = vld [vmem:[%s324 + $0x110] sm:$0xff]
        %v568 = vld [vmem:[%s324 + $0x118] sm:$0xff]
        %v569 = vld [vmem:[%s324 + $0x120] sm:$0xff]
        %v570 = vld [vmem:[%s324 + $0x128] sm:$0xff]
        %v571 = vld [vmem:[%s324 + $0x130] sm:$0xff]
        %v572 = vld [vmem:[%s324 + $0x138] sm:$0xff]
        %vm573 = vcmask 523264
        %v575 = vsel %vm573, %v531, 0
        %577 = vmatprep.subr.mxu0 0.0
        %578 = vmatpush1.msra.mxu0 %v533
        %579 = vmatprep.subr.mxu0 0.0
        %580 = vmatpush1.msra.mxu0 %v534
        %581 = vmatprep.subr.mxu0 0.0
        %582 = vmatpush1.msra.mxu0 %v535
        %583 = vmatprep.subr.mxu0 0.0
        %584 = vmatpush1.msra.mxu0 %v536
        %585 = vmatprep.subr.mxu0 0.0
        %586 = vmatpush1.msra.mxu0 %v537
        %587 = vmatprep.subr.mxu0 0.0
        %588 = vmatpush1.msra.mxu0 %v538
        %589 = vmatprep.subr.mxu0 0.0
        %590 = vmatpush1.msra.mxu0 %v539
        %591 = vmatprep.subr.mxu0 0.0
        %592 = vmatpush1.msra.mxu0 %v540
        %593 = vmatprep.subr.mxu0 0.0
        %594 = vmatpush1.msra.mxu0 %v541
        %595 = vmatprep.subr.mxu0 0.0
        %596 = vmatpush1.msra.mxu0 %v542
        %597 = vmatprep.subr.mxu0 0.0
        %598 = vmatpush1.msra.mxu0 %v543
        %599 = vmatprep.subr.mxu0 0.0
        %600 = vmatpush1.msra.mxu0 %v544
        %601 = vmatprep.subr.mxu0 0.0
        %602 = vmatpush1.msra.mxu0 %v545
        %603 = vmatprep.subr.mxu0 0.0
        %604 = vmatpush1.msra.mxu0 %v546
        %605 = vmatprep.subr.mxu0 0.0
        %606 = vmatpush1.msra.mxu0 %v547
        %607 = vmatprep.subr.mxu0 0.0
        %608 = vmatpush1.msra.mxu0 %v548
        %609 = vmatprep.subr.mxu0 0.0
        %610 = vmatpush1.msra.mxu0 %v549
        %611 = vmatprep.subr.mxu0 0.0
        %612 = vmatpush1.msra.mxu0 %v550
        %613 = vmatprep.subr.mxu0 0.0
        %614 = vmatpush1.msra.mxu0 %v551
        %615 = vmatprep.subr.mxu0 0.0
        %616 = vmatpush1.msra.mxu0 %v552
        %617 = vmatprep.subr.mxu0 0.0
        %618 = vmatpush1.msra.mxu0 %v553
        %619 = vmatprep.subr.mxu0 0.0
        %620 = vmatpush1.msra.mxu0 %v554
        %621 = vmatprep.subr.mxu0 0.0
        %622 = vmatpush1.msra.mxu0 %v555
        %623 = vmatprep.subr.mxu0 0.0
        %624 = vmatpush1.msra.mxu0 %v556
        %625 = vmatprep.subr.mxu0 0.0
        %626 = vmatpush1.msra.mxu0 %v557
        %627 = vmatprep.subr.mxu0 0.0
        %628 = vmatpush1.msra.mxu0 %v558
        %629 = vmatprep.subr.mxu0 0.0
        %630 = vmatpush1.msra.mxu0 %v559
        %631 = vmatprep.subr.mxu0 0.0
        %632 = vmatpush1.msra.mxu0 %v560
        %633 = vmatprep.subr.mxu0 0.0
        %634 = vmatpush1.msra.mxu0 %v561
        %635 = vmatprep.subr.mxu0 0.0
        %636 = vmatpush1.msra.mxu0 %v562
        %637 = vmatprep.subr.mxu0 0.0
        %638 = vmatpush1.msra.mxu0 %v563
        %639 = vmatprep.subr.mxu0 0.0
        %640 = vmatpush1.msra.mxu0 %v564
        %641 = vmatprep.mubr.f32.mxu0 %v530
        %642 = vmatmul.mubr.f32.gmra.mrb[0].mxu0 %v529
        %v643 = vpop.f32.mrb[0].mxu0
        %v644 = vadd.f32 0.0, %v643
        %v645 = vpop.f32.mrb[0].mxu0
        %646 = vdwg.mxu0
        %647 = vmatprep.subr.mxu0 0.0
        %648 = vmatpush1.msra.mxu0 %v565
        %649 = vmatprep.subr.mxu0 0.0
        %650 = vmatpush1.msra.mxu0 %v566
        %651 = vmatprep.subr.mxu0 0.0
        %652 = vmatpush1.msra.mxu0 %v567
        %653 = vmatprep.subr.mxu0 0.0
        %654 = vmatpush1.msra.mxu0 %v568
        %655 = vmatprep.subr.mxu0 0.0
        %656 = vmatpush1.msra.mxu0 %v569
        %657 = vmatprep.subr.mxu0 0.0
        %658 = vmatpush1.msra.mxu0 %v570
        %659 = vmatprep.subr.mxu0 0.0
        %660 = vmatpush1.msra.mxu0 %v571
        %661 = vmatprep.subr.mxu0 0.0
        %662 = vmatpush1.msra.mxu0 %v572
        %663 = vmatprep.subr.mxu0 0.0
        %664 = vmatpush1.msra.mxu0 0.0
        %665 = vmatprep.subr.mxu0 0.0
        %666 = vmatpush1.msra.mxu0 0.0
        %667 = vmatprep.subr.mxu0 0.0
        %668 = vmatpush1.msra.mxu0 0.0
        %669 = vmatprep.subr.mxu0 0.0
        %670 = vmatpush1.msra.mxu0 0.0
        %671 = vmatprep.subr.mxu0 0.0
        %672 = vmatpush1.msra.mxu0 0.0
        %673 = vmatprep.subr.mxu0 0.0
        %674 = vmatpush1.msra.mxu0 0.0
        %675 = vmatprep.subr.mxu0 0.0
        %676 = vmatpush1.msra.mxu0 0.0
        %677 = vmatprep.subr.mxu0 0.0
        %678 = vmatpush1.msra.mxu0 0.0
        %679 = vmatprep.subr.mxu0 0.0
        %680 = vmatpush1.msra.mxu0 0.0
        %681 = vmatprep.subr.mxu0 0.0
        %682 = vmatpush1.msra.mxu0 0.0
        %683 = vmatprep.subr.mxu0 0.0
        %684 = vmatpush1.msra.mxu0 0.0
        %685 = vmatprep.subr.mxu0 0.0
        %686 = vmatpush1.msra.mxu0 0.0
        %687 = vmatprep.subr.mxu0 0.0
        %688 = vmatpush1.msra.mxu0 0.0
        %689 = vmatprep.subr.mxu0 0.0
        %690 = vmatpush1.msra.mxu0 0.0
        %691 = vmatprep.subr.mxu0 0.0
        %692 = vmatpush1.msra.mxu0 0.0
        %693 = vmatprep.subr.mxu0 0.0
        %694 = vmatpush1.msra.mxu0 0.0
        %695 = vmatprep.subr.mxu0 0.0
        %696 = vmatpush1.msra.mxu0 0.0
        %697 = vmatprep.subr.mxu0 0.0
        %698 = vmatpush1.msra.mxu0 0.0
        %699 = vmatprep.subr.mxu0 0.0
        %700 = vmatpush1.msra.mxu0 0.0
        %701 = vmatprep.subr.mxu0 0.0
        %702 = vmatpush1.msra.mxu0 0.0
        %703 = vmatprep.subr.mxu0 0.0
        %704 = vmatpush1.msra.mxu0 0.0
        %705 = vmatprep.subr.mxu0 0.0
        %706 = vmatpush1.msra.mxu0 0.0
        %707 = vmatprep.subr.mxu0 0.0
        %708 = vmatpush1.msra.mxu0 0.0
        %709 = vmatprep.subr.mxu0 0.0
        %710 = vmatpush1.msra.mxu0 0.0
        %711 = vmatprep.mubr.f32.mxu0 0.0
        %712 = vmatmul.mubr.f32.gmra.mrb[0].mxu0 %v575
        %v713 = vpop.f32.mrb[0].mxu0
        %v714 = vadd.f32 %v644, %v713
        %v715 = vpop.f32.mrb[0].mxu0
        %716 = vdwg.mxu0
        %v717 = vadd.f32 %v532, %v714
        %718 = vst.msk [vmem:[%s301] sm:$0xff] %vm573, %v717
        %s719 = sand.u32 %s180, 1
        %s720 = scalar_lea.sflag [#allocation3], %s719
        %s721 = sand.u32 %s180, 1
        %s722 = smul.addr %s721, 8
        %s723 = scalar_lea.vmem [#allocation2], %s722
        // Predicated region
        $region45: #{_apply.1} parent=39 // pred_check
          %p724 = pneg %p190
        $region46: #{_apply.1} parent=39 // pred_check_branch
          %726 = sbr.rel (%p724) target = $region48
        $region47: #{_apply.1} parent=39 // pred_region
          %s728 = ssub.s32 128, 128
          %729 = vsyncadd %s720, %s728
          %s730 = sadd.s32 %s25, %s24
          %s731 = smul.addr %s730, 128
          %s732 = scalar_lea.hbm %s5, %s731
          %s734 = sshll.u32 %s723, 4
          %s735 = int_to_ptr.vmem [resolvable:$true] %s734
          %737 = dma.vmem_to_hbm [thread:$0]  %s735, 128, %s732, %s720
        $region48: #{_apply.1} parent=39 // pred_fallthru
          _
      $region40: #{_apply.1} parent=5 // pred_fallthru
        _
      %p738 = scmp.le.s32.totalorder 2, %s14
      // Predicated region
      $region49: #{_apply.1} parent=5 // pred_check
        %p739 = pneg %p738
      $region50: #{_apply.1} parent=5 // pred_check_branch
        %741 = sbr.rel (%p739) target = $region52
      $region51: #{_apply.1} parent=5 // pred_region
        %s742 = ssub.s32 %s14, 2
        // Predicated region
        $region53: #{_apply.1} parent=51 // pred_check
          %p743 = pneg %p196
        $region54: #{_apply.1} parent=51 // pred_check_branch
          %745 = sbr.rel (%p743) target = $region56
        $region55: #{_apply.1} parent=51 // pred_region
          %s746 = sand.u32 %s181, 1
          %s747 = scalar_lea.sflag [#allocation3], %s746
          %s748 = sand.u32 %s181, 1
          %s749 = smul.addr %s748, 8
          %s750 = scalar_lea.vmem [#allocation2], %s749
          %751 = dma.done %s747, 128
        $region56: #{_apply.1} parent=51 // pred_fallthru
          _
      $region52: #{_apply.1} parent=5 // pred_fallthru
        _
    $region6: #{_apply.1} parent=1 // loop_footer
      %s18 = sadd.s32 1, %s14
    $region7: #{_apply.1} parent=1 // loop_footer_branch
      %13 = sbr.rel target = $region3
    $region8: #{_apply.1} parent=1 // loop_exit
      _
    %752 = vsyncpa [#allocation3], 1
    %s753 = scalar_lea.sflag [#allocation3], 1
    %754 = vsyncpa %s753, 1

</llo_original>
